<compile_context>
chip_gen: v7x
topology: tpu7x:2x2x1
jax: 0.10.0
libtpu: 0.0.40
codegen_flags: <defaults>
</compile_context>

<pallas_src>
import functools

import jax
import jax.numpy as jnp
from jax import lax
from jax.experimental import pallas as pl
from jax.experimental.pallas import tpu as pltpu


_MAX_ROW_TILE = 512                       # ~85% of HBM roofline already at 512
_WORKING_SET_BUDGET = 24 * 1024 * 1024    # per-step VMEM working-set target
_VMEM_SLACK = 8 * 1024 * 1024             # Mosaic internal scratch headroom


def _rmsnorm_kernel(x_ref, w_ref, o_ref, *, eps: float):
    # x_ref: (tm, D) tile; w_ref: (1, D) f32 (constant index_map -> VMEM-resident)
    x = x_ref[...].astype(jnp.float32)
    ms = jnp.mean(x * x, axis=-1, keepdims=True)       # (tm, 1), f32, XLU reduce
    y = x * lax.rsqrt(ms + eps)                        # EUP rsqrt, f32
    o_ref[...] = (y * w_ref[...]).astype(o_ref.dtype)  # scale, cast back


def _sublane_multiple(dtype) -> int:
    # Rows per full vreg sublane group: 8 for 4-byte, 16 for 2-byte, 32 for 1-byte.
    itemsize = max(1, jnp.dtype(dtype).itemsize)
    return max(8, 8 * (4 // itemsize))


def _pick_row_tile(rows: int, dim: int, dtype) -> int:
    """Sublane-aligned row tile: bounded working set, >= ~8 grid steps, <= 512."""
    itemsize = jnp.dtype(dtype).itemsize
    mult = _sublane_multiple(dtype)
    # Per-row bytes: 2x double-buffered input tile + 2x double-buffered output
    # tile + ~16 B/row-element of f32 temporaries (upcast, x*x, y, y*w).
    bytes_per_row = dim * (4 * itemsize + 16)
    budget = max(bytes_per_row, _WORKING_SET_BUDGET - 8 * dim)  # minus f32 weight
    tm_budget = max(mult, budget // bytes_per_row)
    # Keep >= ~8 grid steps when rows allow (>= 4 steps per TC on v7x megacore,
    # so BlockSpec double-buffering actually overlaps DMA with compute).
    steps_target = -(-rows // 8)                   # ceil(rows / 8)
    tm_steps = -(-steps_target // mult) * mult     # round up to sublane multiple
    tm = min(tm_budget, _MAX_ROW_TILE, tm_steps)
    tm = max(mult, (tm // mult) * mult)            # round down, floor at mult
    return int(tm)


def rmsnorm(x: jax.Array, weight: jax.Array, eps: float = 1e-6,
            *, row_tile: int | None = None) -> jax.Array:
    """Pallas RMSNorm over the last axis of x (any leading dims)."""
    orig_shape = x.shape
    dim = orig_shape[-1]
    assert weight.shape == (dim,)

    x2d = x.reshape(-1, dim)
    rows = x2d.shape[0]

    tm = _pick_row_tile(rows, dim, x.dtype) if row_tile is None else int(row_tile)

    # No padding / slicing: ragged last block handled by Pallas (grid = cdiv).
    # OOB reads in the final block are unspecified but only feed OOB output
    # rows, whose writes are masked — safe because RMSNorm is per-row.
    grid = (pl.cdiv(rows, tm),)

    # Cast weight to f32 once here instead of per grid step inside the kernel.
    w2d = weight.astype(jnp.float32).reshape(1, dim)

    # vmem_limit: actual working set + slack, never the whole physical VMEM
    # (stays <= 64 MiB, so it is valid on v7x's per-TC VMEM as well).
    itemsize = jnp.dtype(x.dtype).itemsize
    working_set = tm * dim * (4 * itemsize + 16) + 8 * dim
    vmem_limit = int(min(64 << 20, max(16 << 20, working_set + _VMEM_SLACK)))

    out2d = pl.pallas_call(
        functools.partial(_rmsnorm_kernel, eps=eps),
        out_shape=jax.ShapeDtypeStruct((rows, dim), x.dtype),
        grid_spec=pltpu.PrefetchScalarGridSpec(
            num_scalar_prefetch=0,
            grid=grid,
            in_specs=[
                pl.BlockSpec((tm, dim), lambda i: (i, 0)),   # x row-tile
                pl.BlockSpec((1, dim), lambda i: (0, 0)),    # weight (resident)
            ],
            out_specs=pl.BlockSpec((tm, dim), lambda i: (i, 0)),
        ),
        compiler_params=pltpu.CompilerParams(
            dimension_semantics=("parallel",),
            vmem_limit_bytes=vmem_limit),
    )(x2d, w2d)

    return out2d.reshape(orig_shape)


def rmsnorm_ref(x, weight, eps=1e-6):
    xf = x.astype(jnp.float32)
    y = xf * lax.rsqrt(jnp.mean(xf * xf, axis=-1, keepdims=True) + eps)
    return (y * weight.astype(jnp.float32)).astype(x.dtype)


if __name__ == "__main__":
    key = jax.random.PRNGKey(0)
    batch, seq, hidden = 2, 8, 32

    x = jax.random.normal(key, (batch, seq, hidden), dtype=jnp.bfloat16)
    # Deterministic parameter init: RMSNorm.__init__ uses ones(dim).
    weight = jnp.ones((hidden,), dtype=jnp.float32)

    out = rmsnorm(x, weight, eps=1e-6)
    out = jax.block_until_ready(out)

    ref = rmsnorm_ref(x, weight, eps=1e-6)
    assert out.shape == x.shape and out.dtype == x.dtype
    assert jnp.allclose(out.astype(jnp.float32), ref.astype(jnp.float32),
                        atol=2e-2, rtol=2e-2)

    # Exercise the ragged-last-block path (rows % tm != 0, no padding) and f32.
    x2 = jax.random.normal(jax.random.PRNGKey(1), (3, 7, hidden), jnp.float32)
    out2 = jax.block_until_ready(rmsnorm(x2, weight))
    ref2 = rmsnorm_ref(x2, weight)
    assert out2.shape == x2.shape and out2.dtype == x2.dtype
    assert jnp.allclose(out2, ref2, atol=1e-5, rtol=1e-5)

    # Explicit small row_tile override to force a multi-step ragged grid.
    out3 = jax.block_until_ready(rmsnorm(x2, weight, row_tile=8))
    assert jnp.allclose(out3, ref2, atol=1e-5, rtol=1e-5)

    print("KERNEL_OK")
</pallas_src>

<mosaic_0001>
module attributes {stable_mosaic.version = 11 : i64} {
  func.func @_rmsnorm_kernel(%arg0: i32, %arg1: memref<16x32xbf16, #tpu.memory_space<vmem>>, %arg2: memref<1x32xf32, #tpu.memory_space<vmem>>, %arg3: memref<16x32xbf16, #tpu.memory_space<vmem>>) attributes {dimension_semantics = [#tpu.dimension_semantics<parallel>], iteration_bounds = array<i64: 1>, scalar_prefetch = 0 : i64, scratch_operands = 0 : i64, tpu.core_type = #tpu.core_type<tc>, window_params = [{transform_indices = @transform_0, window_bounds = array<i64: 16, 32>}, {pipeline_mode = #tpu.pipeline_mode<synchronous>, transform_indices = @transform_1, window_bounds = array<i64: 1, 32>}, {transform_indices = @transform_2, window_bounds = array<i64: 16, 32>}]} {
    %c0 = arith.constant 0 : index
    %c0_0 = arith.constant 0 : index
    %0 = vector.load %arg1[%c0, %c0_0] : memref<16x32xbf16, #tpu.memory_space<vmem>>, vector<16x32xbf16>
    %1 = arith.extf %0 : vector<16x32xbf16> to vector<16x32xf32>
    %2 = arith.mulf %1, %1 : vector<16x32xf32>
    %cst = arith.constant dense<0.000000e+00> : vector<16xf32>
    %3 = vector.multi_reduction <add>, %2, %cst [1] : vector<16x32xf32> to vector<16xf32>
    %4 = vector.shape_cast %3 : vector<16xf32> to vector<16x1xf32>
    %cst_1 = arith.constant 3.200000e+01 : f32
    %5 = vector.broadcast %cst_1 : f32 to vector<16x1xf32>
    %6 = arith.divf %4, %5 : vector<16x1xf32>
    %cst_2 = arith.constant 9.99999997E-7 : f32
    %7 = vector.broadcast %cst_2 : f32 to vector<16x1xf32>
    %8 = arith.addf %6, %7 : vector<16x1xf32>
    %9 = math.rsqrt %8 : vector<16x1xf32>
    %10 = vector.broadcast %9 : vector<16x1xf32> to vector<16x32xf32>
    %11 = arith.mulf %1, %10 : vector<16x32xf32>
    %c0_3 = arith.constant 0 : index
    %c0_4 = arith.constant 0 : index
    %12 = vector.load %arg2[%c0_3, %c0_4] : memref<1x32xf32, #tpu.memory_space<vmem>>, vector<1x32xf32>
    %13 = vector.broadcast %12 : vector<1x32xf32> to vector<16x32xf32>
    %14 = arith.mulf %11, %13 : vector<16x32xf32>
    %15 = arith.truncf %14 : vector<16x32xf32> to vector<16x32xbf16>
    %c0_5 = arith.constant 0 : index
    %c0_6 = arith.constant 0 : index
    %16 = vector.load %arg3[%c0_5, %c0_6] : memref<16x32xbf16, #tpu.memory_space<vmem>>, vector<16x32xbf16>
    tpu.vector_store %arg3[%c0_5, %c0_6], %15 {strides = array<i32>} : memref<16x32xbf16, #tpu.memory_space<vmem>>, vector<16x32xbf16>,
    return
  }
  func.func @transform_0(%arg0: i32) -> (i32, i32) {
    %c0_i32 = arith.constant 0 : i32
    %c0_i32_0 = arith.constant 0 : i32
    return %arg0, %c0_i32 : i32, i32
  }
  func.func @transform_1(%arg0: i32) -> (i32, i32) {
    %c0_i32 = arith.constant 0 : i32
    %c0_i32_0 = arith.constant 0 : i32
    %c0_i32_1 = arith.constant 0 : i32
    return %c0_i32, %c0_i32_0 : i32, i32
  }
  func.func @transform_2(%arg0: i32) -> (i32, i32) {
    %c0_i32 = arith.constant 0 : i32
    %c0_i32_0 = arith.constant 0 : i32
    return %arg0, %c0_i32 : i32, i32
  }
}

</mosaic_0001>

<llo_original>
// kernel: tpu_custom_call.1
$region0: #{tpu_custom_call.1}
  #allocation0 [shape = 'u32[]', space=smem, size = 0x4, offset = 0x4, fixed_abs, tag = 'smem constant byte address 0x4 - core index']
  #allocation1 [shape = 'u32[144,128]{1,0:T(1,128)}', space=vmem, size = 0x12000, scoped, tag = 'internal scratch']
  %s0 = inlined_call_operand.hbm [shape: bf16[16,32], index: 0, kind: input, shape index: {}]
  %s1 = inlined_call_operand.vmem [shape: f32[1,32], index: 1, kind: input, shape index: {}]
  %s2 = inlined_call_operand.hbm [shape: bf16[16,32], index: 2, kind: output, shape index: {}]
  %s3 = sld [smem:[#allocation0]]
  $region22: #{tpu_custom_call.1} parent=0
    _
  %s5 = ssub.s32 1, %s3
  %s6 = scalar_select 0, %s5, %s3
  $region1: #{tpu_custom_call.1} parent=0
    #allocation2 [shape = 'u8[4096]{0}', space=vmem, size = 0x1000, scoped, tag = 'input window, operand 0, single buffered']
    #allocation3 [shape = 's32[1]{0}', space=sflag, size = 0x4, scoped, tag = 'scoped memory for tpu_custom_call.1']
    #allocation4 [shape = 's32[1]{0}', space=sflag, size = 0x4, scoped, tag = 'scoped memory for tpu_custom_call.1']
    #allocation5 [shape = 'u8[4096]{0}', space=vmem, size = 0x1000, scoped, tag = 'output window, operand 0, single buffered']
    %7 = vsyncpa [#allocation3], 0
    %8 = vsyncpa [#allocation4], 0
    // Predicated region
    $region2: #{tpu_custom_call.1} parent=1 // pred_check
      _
    $region3: #{tpu_custom_call.1} parent=1 // pred_check_branch
      %10 = sbr.rel (0) target = $region5
    $region4: #{tpu_custom_call.1} parent=1 // pred_region
      %s12 = ssub.s32 128, 128
      %13 = vsyncadd [#allocation3], %s12
      %s14 = sshll.u32 [#allocation2], 4
      %s15 = int_to_ptr.vmem [resolvable:$true] %s14
      %20 = dma.hbm_to_vmem [thread:$0]  %s0, 128, %s15, [#allocation3], 64, 64, 4
    $region5: #{tpu_custom_call.1} parent=1 // pred_fallthru
      _
    // Predicated region
    $region6: #{tpu_custom_call.1} parent=1 // pred_check
      _
    $region7: #{tpu_custom_call.1} parent=1 // pred_check_branch
      %22 = sbr.rel (0) target = $region9
    $region8: #{tpu_custom_call.1} parent=1 // pred_region
      _
    $region9: #{tpu_custom_call.1} parent=1 // pred_fallthru
      _
    // Predicated region
    $region10: #{tpu_custom_call.1} parent=1 // pred_check
      _
    $region11: #{tpu_custom_call.1} parent=1 // pred_check_branch
      %24 = sbr.rel (0) target = $region13
    $region12: #{tpu_custom_call.1} parent=1 // pred_region
      %25 = dma.done [#allocation3], 128
    $region13: #{tpu_custom_call.1} parent=1 // pred_fallthru
      _
    %v26 = vld [vmem:[#allocation2] sm:$0xf]
    %v27 = vld [vmem:[#allocation2 + $0x4] sm:$0xf]
    %v28 = vunpack.c.l.bf16 %v26
    %v29 = vunpack.c.l.bf16 %v27
    %v30 = vmul.f32 %v28, %v28
    %v31 = vmul.f32 %v29, %v29
    %vm32 = vcmask 261120
    %v33 = vsel %vm32, %v30, 0.0
    %34 = vadd.xlane.f32.xlu0 %v33
    %v35 = vpop.xlane.xlu0 %34
    %v36 = vsel %vm32, %v31, 0.0
    %37 = vadd.xlane.f32.xlu0 %v36
    %v38 = vpop.xlane.xlu0 %37
    %v39 = vrcp.pop 32.0
    %v40 = vmul.f32 %v35, %v39
    %v41 = vmul.f32 %v38, %v39
    %v42 = vadd.f32 %v40, 1e-06
    %v43 = vadd.f32 %v41, 1e-06
    %v44 = vrsqrt.pop %v42
    %v45 = vrsqrt.pop %v43
    %v46 = vmul.f32 %v28, %v44
    %v47 = vmul.f32 %v29, %v45
    %v48 = vld [vmem:[%s1] sm:$0x1]
    %v50 = vlaneseq
    %v51 = vshrl.u32 %v50, 7
    %v52 = vsub.s32 0, %v51
    %v53 = vrot.slane %v48, %v52
    %v55 = vmul.f32 %v46, %v53
    %v56 = vmul.f32 %v47, %v53
    %v57 = vpack.c.bf16 %v56, %v55
    %v59 = vunpack.c.l.b16 %v57
    %v60 = vunpack.c.h.b16 %v57
    %v61 = vpack.c.b16 %v59, %v59
    %v62 = vpack.c.b16 %v60, %v60
    %vm65 = vcmask 257024
    %66 = vst.msk [vmem:[#allocation5] sm:$0xf] %vm65, %v61
    %67 = vst.msk [vmem:[#allocation5 + $0x4] sm:$0xf] %vm65, %v62
    // Predicated region
    $region14: #{tpu_custom_call.1} parent=1 // pred_check
      _
    $region15: #{tpu_custom_call.1} parent=1 // pred_check_branch
      %69 = sbr.rel (0) target = $region17
    $region16: #{tpu_custom_call.1} parent=1 // pred_region
      %s71 = ssub.s32 128, 128
      %72 = vsyncadd [#allocation4], %s71
      %s73 = sshll.u32 [#allocation5], 4
      %s74 = int_to_ptr.vmem [resolvable:$true] %s73
      %79 = dma.vmem_to_hbm [thread:$0]  %s74, 128, %s2, [#allocation4], 64, 64, 4
    $region17: #{tpu_custom_call.1} parent=1 // pred_fallthru
      _
    // Predicated region
    $region18: #{tpu_custom_call.1} parent=1 // pred_check
      _
    $region19: #{tpu_custom_call.1} parent=1 // pred_check_branch
      %81 = sbr.rel (0) target = $region21
    $region20: #{tpu_custom_call.1} parent=1 // pred_region
      %82 = dma.done [#allocation4], 128
    $region21: #{tpu_custom_call.1} parent=1 // pred_fallthru
      _
    %83 = vsyncpa [#allocation3], 1
    %84 = vsyncpa [#allocation4], 1

</llo_original>
